<compile_context>
chip_gen: v7x
topology: tpu7x:2x2x1
jax: 0.10.0
libtpu: 0.0.40
codegen_flags: <defaults>
</compile_context>

<pallas_src>
import functools

import jax
import jax.numpy as jnp
import numpy as np
from jax.experimental import pallas as pl
from jax.experimental.pallas import tpu as pltpu

LOG_STD_MAX = 2.0
LOG_STD_MIN = -5.0

_VMEM = pl.BlockSpec(memory_space=pltpu.MemorySpace.VMEM)


def _squash_log_std(log_std):
    t = jnp.tanh(log_std)
    return LOG_STD_MIN + 0.5 * (LOG_STD_MAX - LOG_STD_MIN) * (t + 1.0)


# -----------------------------------------------------------------------------
# Kernel 1: single delayed step (list interface).  Only output = new state slab
# (lane-dense, 128 wide).  mean/log_std depend only on the OLD slab and are
# computed in the wrapper with plain jnp (tiny).
# -----------------------------------------------------------------------------
def _step_kernel(obs_ref, state_ref, w_obs_ref, w_state_ref, b_ref,
                 new_state_ref, *, hidden_total):
    obs = obs_ref[...]                                   # [B, Din]   f32
    state = state_ref[...]                               # [B, S_PAD] f32 (old slab)

    y = jnp.dot(obs, w_obs_ref[...].astype(jnp.float32),
                preferred_element_type=jnp.float32)
    y = y + jnp.dot(state, w_state_ref[...].astype(jnp.float32),
                    preferred_element_type=jnp.float32)
    y = y + b_ref[...]                                   # [1, S_PAD] broadcast

    # relu only on hidden-layer columns; head (mean/log_std) columns stay linear.
    col = jax.lax.broadcasted_iota(jnp.int32, y.shape, 1)
    y = jnp.where(col < hidden_total, jnp.maximum(y, 0.0), y)
    new_state_ref[...] = y.astype(new_state_ref.dtype)   # one lane-dense store


def fused_forward(fused_params, obs, state_old):
    """One delayed step: (obs [B,Din], slab [B,S_PAD]) -> (new_slab, mean, log_std)."""
    d = fused_params["dims"]
    B = obs.shape[0]
    A, S, ht = d["action_dim"], d["state_pad"], d["hidden_total"]

    # Delayed module outputs come from the OLD slab; compute before the aliased
    # pallas_call so buffer reuse can never interfere in eager mode.
    mean = state_old[:, ht:ht + A]
    log_std = _squash_log_std(state_old[:, ht + A:ht + 2 * A])

    new_state = pl.pallas_call(
        functools.partial(_step_kernel, hidden_total=ht),
        out_shape=jax.ShapeDtypeStruct((B, S), jnp.float32),
        in_specs=[_VMEM] * 5,
        out_specs=_VMEM,
        input_output_aliases={1: 0},     # reuse state_old's HBM buffer for new slab
    )(obs, state_old, fused_params["w_obs"], fused_params["w_state"], fused_params["b"])
    return new_state, mean, log_std


# -----------------------------------------------------------------------------
# Kernel 2: T delayed steps fused into ONE pallas_call.
#   grid=(T,), weights VMEM-resident (constant index_map), state carried in a
#   VMEM scratch, per-step outputs written as one lane-dense [B,S_PAD] slab.
# -----------------------------------------------------------------------------
def _rollout_kernel(obs_seq_ref, state0_ref, w_obs_ref, w_state_ref, b_ref,
                    heads_ref, state_out_ref, state_vmem,
                    *, hidden_total, action_dim):
    t = pl.program_id(0)

    @pl.when(t == 0)
    def _():
        state_vmem[...] = state0_ref[...]

    state = state_vmem[...]                               # OLD slab for this step
    col = jax.lax.broadcasted_iota(jnp.int32, state.shape, 1)

    # Per-step delayed outputs: old slab with its log_std columns tanh-squashed,
    # stored as one unmasked 128-wide slab (wrapper slices mean / log_std).
    in_logstd = (col >= hidden_total + action_dim) & (col < hidden_total + 2 * action_dim)
    heads_ref[0] = jnp.where(in_logstd, _squash_log_std(state), state).astype(heads_ref.dtype)

    # Recurrence: streamed obs + VMEM-resident weights -> new slab.
    obs = obs_seq_ref[0]                                  # [B, Din]
    y = jnp.dot(obs, w_obs_ref[...].astype(jnp.float32),
                preferred_element_type=jnp.float32)
    y = y + jnp.dot(state, w_state_ref[...].astype(jnp.float32),
                    preferred_element_type=jnp.float32)
    y = y + b_ref[...]
    y = jnp.where(col < hidden_total, jnp.maximum(y, 0.0), y)

    state_vmem[...] = y                                   # carry to next step
    state_out_ref[...] = y.astype(state_out_ref.dtype)    # final slab (last write wins)


def rollout_forward(fused_params, obs_seq, state0):
    """T delayed steps in one launch.

    obs_seq [T,B,Din], state0 [B,S_PAD] -> (means [T,B,A], log_stds [T,B,A], state_final).
    """
    d = fused_params["dims"]
    T, B, Din = obs_seq.shape
    A, S, ht = d["action_dim"], d["state_pad"], d["hidden_total"]

    kernel = functools.partial(_rollout_kernel, hidden_total=ht, action_dim=A)
    heads, state_final = pl.pallas_call(
        kernel,
        out_shape=(
            jax.ShapeDtypeStruct((T, B, S), jnp.float32),   # per-step delayed outputs
            jax.ShapeDtypeStruct((B, S), jnp.float32),      # final state slab
        ),
        grid_spec=pltpu.PrefetchScalarGridSpec(
            num_scalar_prefetch=0,
            grid=(T,),
            in_specs=[
                pl.BlockSpec((1, B, Din), lambda t: (t, 0, 0)),   # obs streamed per step
                pl.BlockSpec((B, S), lambda t: (0, 0)),           # state0: one DMA
                pl.BlockSpec((Din, S), lambda t: (0, 0)),          # w_obs: VMEM-resident
                pl.BlockSpec((S, S), lambda t: (0, 0)),            # w_state: VMEM-resident
                pl.BlockSpec((1, S), lambda t: (0, 0)),            # bias: VMEM-resident
            ],
            out_specs=(
                pl.BlockSpec((1, B, S), lambda t: (t, 0, 0)),
                pl.BlockSpec((B, S), lambda t: (0, 0)),
            ),
            scratch_shapes=[pltpu.VMEM((B, S), jnp.float32)],      # carried state slab
        ),
        compiler_params=pltpu.CompilerParams(
            dimension_semantics=("arbitrary",)),                   # sequential recurrence
    )(obs_seq, state0, fused_params["w_obs"], fused_params["w_state"], fused_params["b"])

    means = heads[:, :, ht:ht + A]
    log_stds = heads[:, :, ht + A:ht + 2 * A]
    return means, log_stds, state_final


# -----------------------------------------------------------------------------
# One-time parameter fusion (construction time, NOT the hot path)
# -----------------------------------------------------------------------------
def prepare_fused_params(params, input_dim, hidden_dim, action_dim, n_hidden_layers):
    hidden_total = (n_hidden_layers + 1) * hidden_dim
    raw_width = hidden_total + 2 * action_dim
    state_pad = max(128, int(np.ceil(raw_width / 128.0)) * 128)

    w_obs = np.zeros((input_dim, state_pad), np.float32)
    w_state = np.zeros((state_pad, state_pad), np.float32)
    b_all = np.zeros((1, state_pad), np.float32)

    # block 0: obs -> cols [0, hidden)
    w_obs[:, 0:hidden_dim] = np.asarray(params["blocks"][0]["w"])
    b_all[0, 0:hidden_dim] = np.asarray(params["blocks"][0]["b"])

    # blocks[1:]: cat([obs, old_h[bi-1]]) -> cols [bi*H, (bi+1)*H)
    for bi in range(1, n_hidden_layers + 1):
        w = np.asarray(params["blocks"][bi]["w"])   # [input_dim + hidden, hidden]
        b = np.asarray(params["blocks"][bi]["b"])
        c0, c1 = bi * hidden_dim, (bi + 1) * hidden_dim
        r0, r1 = (bi - 1) * hidden_dim, bi * hidden_dim
        w_obs[:, c0:c1] = w[:input_dim]
        w_state[r0:r1, c0:c1] = w[input_dim:]
        b_all[0, c0:c1] = b

    # heads (merged): cat([obs, old_h[-2]]) -> cols [hidden_total, hidden_total + 2*A)
    r0, r1 = n_hidden_layers * hidden_dim, hidden_total
    for hi, name in enumerate(("fc_mean", "fc_logstd")):
        w = np.asarray(params[name]["w"])
        b = np.asarray(params[name]["b"])
        c0 = hidden_total + hi * action_dim
        c1 = c0 + action_dim
        w_obs[:, c0:c1] = w[:input_dim]
        w_state[r0:r1, c0:c1] = w[input_dim:]
        b_all[0, c0:c1] = b

    return {
        # bf16 weight storage: halves weight VMEM footprint and HBM->VMEM DMA.
        "w_obs": jnp.asarray(w_obs, jnp.bfloat16),
        "w_state": jnp.asarray(w_state, jnp.bfloat16),
        "b": jnp.asarray(b_all),
        "dims": dict(
            input_dim=input_dim, hidden_dim=hidden_dim, action_dim=action_dim,
            n_hidden_layers=n_hidden_layers, hidden_total=hidden_total,
            state_pad=state_pad,
        ),
    }


# -----------------------------------------------------------------------------
# List-of-activations interface (matches the PyTorch module), built on the slab
# -----------------------------------------------------------------------------
def pack_state(hidden_activations, dims):
    hs = list(hidden_activations[:-1])
    mean, log_std = hidden_activations[-1]
    slab = jnp.concatenate(hs + [mean, log_std], axis=1)
    pad = dims["state_pad"] - slab.shape[1]
    if pad:
        slab = jnp.pad(slab, ((0, 0), (0, pad)))
    return slab


def unpack_state(slab, dims):
    H, A, n = dims["hidden_dim"], dims["action_dim"], dims["n_hidden_layers"]
    ht = dims["hidden_total"]
    out = [slab[:, i * H:(i + 1) * H] for i in range(n + 1)]
    out.append((slab[:, ht:ht + A], slab[:, ht + A:ht + 2 * A]))
    return out


def actor_slow_concat_forward(fused_params, obs, hidden_activations):
    dims = fused_params["dims"]
    state_old = pack_state(hidden_activations, dims)
    state_new, mean, log_std = fused_forward(fused_params, obs, state_old)
    return mean, log_std, unpack_state(state_new, dims)


# -----------------------------------------------------------------------------
# Pure-JAX reference (mirrors the PyTorch ActorSlowConcat.forward)
# -----------------------------------------------------------------------------
def _ref_forward(params, obs, hidden_activations):
    def lin(x, p, relu):
        y = x @ p["w"] + p["b"]
        return jnp.maximum(y, 0.0) if relu else y

    new_h = [lin(obs, params["blocks"][0], True)]
    for h_in, blk in zip(hidden_activations[:-2], params["blocks"][1:]):
        new_h.append(lin(jnp.concatenate([obs, h_in], axis=1), blk, True))
    x = jnp.concatenate([obs, hidden_activations[-2]], axis=1)
    new_h.append((lin(x, params["fc_mean"], False), lin(x, params["fc_logstd"], False)))
    mean, log_std = hidden_activations[-1]
    log_std = _squash_log_std(log_std)
    return mean, log_std, new_h


# -----------------------------------------------------------------------------
# Parameter / input construction
# -----------------------------------------------------------------------------
def make_params(key, input_dim, hidden_dim, action_dim, n_hidden_layers):
    def linear_init(k, fan_in, fan_out):
        k1, k2 = jax.random.split(k)
        bound = 1.0 / np.sqrt(fan_in)
        w = jax.random.uniform(k1, (fan_in, fan_out), jnp.float32, -bound, bound)
        # Round weights to bf16-representable values so the bf16-stored fused
        # weights are bit-identical to what the f32 reference uses.
        w = w.astype(jnp.bfloat16).astype(jnp.float32)
        b = jax.random.uniform(k2, (fan_out,), jnp.float32, -bound, bound)
        return {"w": w, "b": b}

    keys = jax.random.split(key, n_hidden_layers + 3)
    blocks = [linear_init(keys[0], input_dim, hidden_dim)]
    for i in range(n_hidden_layers):
        blocks.append(linear_init(keys[1 + i], input_dim + hidden_dim, hidden_dim))
    fc_mean = linear_init(keys[-2], input_dim + hidden_dim, action_dim)
    fc_logstd = linear_init(keys[-1], input_dim + hidden_dim, action_dim)
    return {"blocks": blocks, "fc_mean": fc_mean, "fc_logstd": fc_logstd}


if __name__ == "__main__":
    B = 8            # batch (multiple of 8 sublanes for f32)
    INPUT_DIM = 16   # flattened observation dim
    HIDDEN = 32      # args.actor_hidden_dim
    ACTION_DIM = 4   # np.prod(env.single_action_space.shape)
    N_HIDDEN = 2     # args.N_hidden_layers
    T = 4            # rollout length for the fused recurrence

    key = jax.random.PRNGKey(0)
    k_param, k_obs, k_seq, *k_h = jax.random.split(key, 3 + N_HIDDEN + 3)

    params = make_params(k_param, INPUT_DIM, HIDDEN, ACTION_DIM, N_HIDDEN)
    fused_params = prepare_fused_params(params, INPUT_DIM, HIDDEN, ACTION_DIM, N_HIDDEN)
    dims = fused_params["dims"]

    obs = jax.random.normal(k_obs, (B, INPUT_DIM), jnp.float32)

    # hidden_activations: [h_0, ..., h_N] each [B,HIDDEN], then (mean, log_std) each [B,A]
    hidden_activations = [
        jax.random.normal(k_h[i], (B, HIDDEN), jnp.float32) for i in range(N_HIDDEN + 1)
    ]
    old_mean = jax.random.normal(k_h[N_HIDDEN + 1], (B, ACTION_DIM), jnp.float32)
    old_log_std = jax.random.normal(k_h[N_HIDDEN + 2], (B, ACTION_DIM), jnp.float32)
    hidden_activations.append((old_mean, old_log_std))

    # ---- single delayed step, list interface ----
    mean, log_std, new_h = actor_slow_concat_forward(fused_params, obs, hidden_activations)
    jax.block_until_ready((mean, log_std, new_h))

    r_mean, r_log_std, r_new_h = _ref_forward(params, obs, hidden_activations)
    assert jnp.allclose(mean, r_mean, atol=1e-3)
    assert jnp.allclose(log_std, r_log_std, atol=1e-3)
    for a, b in zip(new_h[:-1], r_new_h[:-1]):
        assert jnp.allclose(a, b, atol=1e-3)
    assert jnp.allclose(new_h[-1][0], r_new_h[-1][0], atol=1e-3)
    assert jnp.allclose(new_h[-1][1], r_new_h[-1][1], atol=1e-3)

    # ---- T-step recurrence fused into ONE pallas_call ----
    obs_seq = jax.random.normal(k_seq, (T, B, INPUT_DIM), jnp.float32)
    state0 = pack_state(hidden_activations, dims)
    means, log_stds, state_final = rollout_forward(fused_params, obs_seq, state0)
    jax.block_until_ready((means, log_stds, state_final))

    ref_h = hidden_activations
    for t in range(T):
        r_mean, r_log_std, ref_h = _ref_forward(params, obs_seq[t], ref_h)
        assert jnp.allclose(means[t], r_mean, atol=1e-3)
        assert jnp.allclose(log_stds[t], r_log_std, atol=1e-3)
    final_unpacked = unpack_state(state_final, dims)
    for a, b in zip(final_unpacked[:-1], ref_h[:-1]):
        assert jnp.allclose(a, b, atol=1e-3)
    assert jnp.allclose(final_unpacked[-1][0], ref_h[-1][0], atol=1e-3)
    assert jnp.allclose(final_unpacked[-1][1], ref_h[-1][1], atol=1e-3)

    print("KERNEL_OK")
</pallas_src>

<mosaic_0001>
module attributes {stable_mosaic.version = 11 : i64} {
  func.func @_step_kernel(%arg0: memref<8x16xf32, #tpu.memory_space<vmem>>, %arg1: memref<8x128xf32, #tpu.memory_space<vmem>>, %arg2: memref<16x128xbf16, #tpu.memory_space<vmem>>, %arg3: memref<128x128xbf16, #tpu.memory_space<vmem>>, %arg4: memref<1x128xf32, #tpu.memory_space<vmem>>, %arg5: memref<8x128xf32, #tpu.memory_space<vmem>>) attributes {dimension_semantics = [], scalar_prefetch = 0 : i64, scratch_operands = 0 : i64, tpu.core_type = #tpu.core_type<tc>} {
    %c0 = arith.constant 0 : index
    %c0_0 = arith.constant 0 : index
    %0 = vector.load %arg0[%c0, %c0_0] : memref<8x16xf32, #tpu.memory_space<vmem>>, vector<8x16xf32>
    %c0_1 = arith.constant 0 : index
    %c0_2 = arith.constant 0 : index
    %1 = vector.load %arg1[%c0_1, %c0_2] : memref<8x128xf32, #tpu.memory_space<vmem>>, vector<8x128xf32>
    %c0_3 = arith.constant 0 : index
    %c0_4 = arith.constant 0 : index
    %2 = vector.load %arg2[%c0_3, %c0_4] : memref<16x128xbf16, #tpu.memory_space<vmem>>, vector<16x128xbf16>
    %3 = arith.extf %2 : vector<16x128xbf16> to vector<16x128xf32>
    %cst = arith.constant dense<0.000000e+00> : vector<8x128xf32>
    %4 = tpu.matmul %0, %3, %cst {dimension_numbers = #tpu.dot_dimension_numbers<[1], [0], [0], [1], [0, 0, 1, 1], [], []>} : vector<8x16xf32>, vector<16x128xf32>, vector<8x128xf32> -> vector<8x128xf32>
    %c0_5 = arith.constant 0 : index
    %c0_6 = arith.constant 0 : index
    %5 = vector.load %arg3[%c0_5, %c0_6] : memref<128x128xbf16, #tpu.memory_space<vmem>>, vector<128x128xbf16>
    %6 = arith.extf %5 : vector<128x128xbf16> to vector<128x128xf32>
    %cst_7 = arith.constant dense<0.000000e+00> : vector<8x128xf32>
    %7 = tpu.matmul %1, %6, %cst_7 {dimension_numbers = #tpu.dot_dimension_numbers<[1], [0], [0], [1], [0, 0, 1, 1], [], []>} : vector<8x128xf32>, vector<128x128xf32>, vector<8x128xf32> -> vector<8x128xf32>
    %8 = arith.addf %4, %7 : vector<8x128xf32>
    %c0_8 = arith.constant 0 : index
    %c0_9 = arith.constant 0 : index
    %9 = vector.load %arg4[%c0_8, %c0_9] : memref<1x128xf32, #tpu.memory_space<vmem>>, vector<1x128xf32>
    %10 = vector.broadcast %9 : vector<1x128xf32> to vector<8x128xf32>
    %11 = arith.addf %8, %10 : vector<8x128xf32>
    %12 = tpu.iota {dimensions = array<i32: 1>} : vector<8x128xi32>
    %c96_i32 = arith.constant 96 : i32
    %13 = vector.broadcast %c96_i32 : i32 to vector<8x128xi32>
    %14 = arith.cmpi slt, %12, %13 : vector<8x128xi32>
    %cst_10 = arith.constant 0.000000e+00 : f32
    %15 = vector.broadcast %cst_10 : f32 to vector<8x128xf32>
    %16 = arith.maximumf %11, %15 : vector<8x128xf32>
    %17 = arith.select %14, %16, %11 : vector<8x128xi1>, vector<8x128xf32>
    %c0_11 = arith.constant 0 : index
    %c0_12 = arith.constant 0 : index
    %18 = vector.load %arg5[%c0_11, %c0_12] : memref<8x128xf32, #tpu.memory_space<vmem>>, vector<8x128xf32>
    tpu.vector_store %arg5[%c0_11, %c0_12], %17 {strides = array<i32>} : memref<8x128xf32, #tpu.memory_space<vmem>>, vector<8x128xf32>,
    return
  }
}

</mosaic_0001>

<llo_original>
// kernel: tpu_custom_call.1
$region0: #{tpu_custom_call.1}
  #allocation0 [shape = 'u32[]', space=smem, size = 0x4, offset = 0x4, fixed_abs, tag = 'smem constant byte address 0x4 - core index']
  #allocation1 [shape = 'u32[144,128]{1,0:T(1,128)}', space=vmem, size = 0x12000, scoped, tag = 'internal scratch']
  %s0 = inlined_call_operand.vmem [shape: f32[8,16], index: 0, kind: input, shape index: {}]
  %s1 = inlined_call_operand.hbm [shape: f32[8,128], index: 1, kind: input, shape index: {}, may-alias: {1,5}]
  %s2 = inlined_call_operand.vmem [shape: bf16[16,128], index: 2, kind: input, shape index: {}]
  %s3 = inlined_call_operand.hbm [shape: bf16[128,128], index: 3, kind: input, shape index: {}]
  %s4 = inlined_call_operand.hbm [shape: f32[1,128], index: 4, kind: input, shape index: {}]
  %s5 = inlined_call_operand.hbm [shape: f32[8,128], index: 5, kind: output, shape index: {}, may-alias: {1,5}]
  %s6 = sld [smem:[#allocation0]]
  $region42: #{tpu_custom_call.1} parent=0
    _
  %s8 = ssub.s32 1, %s6
  %s9 = scalar_select 0, %s8, %s6
  $region1: #{tpu_custom_call.1} parent=0
    #allocation2 [shape = 'u8[4096]{0}', space=vmem, size = 0x1000, scoped, tag = 'input window, operand 1, single buffered']
    #allocation3 [shape = 's32[1]{0}', space=sflag, size = 0x4, scoped, tag = 'scoped memory for tpu_custom_call.1']
    #allocation4 [shape = 's32[1]{0}', space=sflag, size = 0x4, scoped, tag = 'scoped memory for tpu_custom_call.1']
    #allocation5 [shape = 'u8[32768]{0}', space=vmem, size = 0x8000, scoped, tag = 'input window, operand 3, single buffered']
    #allocation6 [shape = 's32[1]{0}', space=sflag, size = 0x4, scoped, tag = 'scoped memory for tpu_custom_call.1']
    #allocation7 [shape = 'u8[512]{0}', space=vmem, size = 0x400, scoped, tag = 'input window, operand 4, single buffered']
    #allocation8 [shape = 'u8[4096]{0}', space=vmem, size = 0x1000, scoped, tag = 'output window, operand 0, single buffered']
    %10 = vsyncpa [#allocation3], 0
    %11 = vsyncpa [#allocation6], 0
    %12 = vsyncpa [#allocation4], 0
    // Predicated region
    $region2: #{tpu_custom_call.1} parent=1 // pred_check
      _
    $region3: #{tpu_custom_call.1} parent=1 // pred_check_branch
      %14 = sbr.rel (0) target = $region5
    $region4: #{tpu_custom_call.1} parent=1 // pred_region
      _
    $region5: #{tpu_custom_call.1} parent=1 // pred_fallthru
      _
    // Predicated region
    $region6: #{tpu_custom_call.1} parent=1 // pred_check
      _
    $region7: #{tpu_custom_call.1} parent=1 // pred_check_branch
      %16 = sbr.rel (0) target = $region9
    $region8: #{tpu_custom_call.1} parent=1 // pred_region
      %s18 = ssub.s32 128, 128
      %19 = vsyncadd [#allocation3], %s18
      %s21 = sshll.u32 [#allocation2], 4
      %s22 = int_to_ptr.vmem [resolvable:$true] %s21
      %24 = dma.hbm_to_vmem [thread:$0]  %s1, 128, %s22, [#allocation3]
    $region9: #{tpu_custom_call.1} parent=1 // pred_fallthru
      _
    // Predicated region
    $region10: #{tpu_custom_call.1} parent=1 // pred_check
      _
    $region11: #{tpu_custom_call.1} parent=1 // pred_check_branch
      %26 = sbr.rel (0) target = $region13
    $region12: #{tpu_custom_call.1} parent=1 // pred_region
      _
    $region13: #{tpu_custom_call.1} parent=1 // pred_fallthru
      _
    // Predicated region
    $region14: #{tpu_custom_call.1} parent=1 // pred_check
      _
    $region15: #{tpu_custom_call.1} parent=1 // pred_check_branch
      %28 = sbr.rel (0) target = $region17
    $region16: #{tpu_custom_call.1} parent=1 // pred_region
      %s30 = ssub.s32 1024, 1024
      %31 = vsyncadd [#allocation6], %s30
      %s32 = sshll.u32 [#allocation5], 4
      %s33 = int_to_ptr.vmem [resolvable:$true] %s32
      %38 = dma.hbm_to_vmem [thread:$0]  %s3, 1024, %s33, [#allocation6], 64, 64, 4
    $region17: #{tpu_custom_call.1} parent=1 // pred_fallthru
      _
    // Predicated region
    $region18: #{tpu_custom_call.1} parent=1 // pred_check
      _
    $region19: #{tpu_custom_call.1} parent=1 // pred_check_branch
      %40 = sbr.rel (0) target = $region21
    $region20: #{tpu_custom_call.1} parent=1 // pred_region
      %s42 = ssub.s32 16, 16
      %43 = vsyncadd [#allocation6], %s42
      %s45 = sshll.u32 [#allocation7], 4
      %s46 = int_to_ptr.vmem [resolvable:$true] %s45
      %48 = dma.hbm_to_vmem [thread:$0]  %s4, 16, %s46, [#allocation6]
    $region21: #{tpu_custom_call.1} parent=1 // pred_fallthru
      _
    // Predicated region
    $region22: #{tpu_custom_call.1} parent=1 // pred_check
      _
    $region23: #{tpu_custom_call.1} parent=1 // pred_check_branch
      %50 = sbr.rel (0) target = $region25
    $region24: #{tpu_custom_call.1} parent=1 // pred_region
      %51 = dma.done [#allocation3], 128
    $region25: #{tpu_custom_call.1} parent=1 // pred_fallthru
      _
    // Predicated region
    $region26: #{tpu_custom_call.1} parent=1 // pred_check
      _
    $region27: #{tpu_custom_call.1} parent=1 // pred_check_branch
      %53 = sbr.rel (0) target = $region29
    $region28: #{tpu_custom_call.1} parent=1 // pred_region
      %54 = dma.done [#allocation6], 1024
    $region29: #{tpu_custom_call.1} parent=1 // pred_fallthru
      _
    // Predicated region
    $region30: #{tpu_custom_call.1} parent=1 // pred_check
      _
    $region31: #{tpu_custom_call.1} parent=1 // pred_check_branch
      %56 = sbr.rel (0) target = $region33
    $region32: #{tpu_custom_call.1} parent=1 // pred_region
      %57 = dma.done [#allocation6], 16
    $region33: #{tpu_custom_call.1} parent=1 // pred_fallthru
      _
    %v58 = vld [vmem:[%s0] sm:$0xff]
    %v59 = vld [vmem:[#allocation2] sm:$0xff]
    %v60 = vld [vmem:[%s2] sm:$0xf]
    %v61 = vld [vmem:[%s2 + $0x4] sm:$0xf]
    %v62 = vunpack.c.l.bf16 %v60
    %v63 = vunpack.c.l.bf16 %v61
    %v64 = vld [vmem:[#allocation5] sm:$0xf]
    %v65 = vld [vmem:[#allocation5 + $0x4] sm:$0xf]
    %v66 = vld [vmem:[#allocation5 + $0x8] sm:$0xf]
    %v67 = vld [vmem:[#allocation5 + $0xc] sm:$0xf]
    %v68 = vld [vmem:[#allocation5 + $0x10] sm:$0xf]
    %v69 = vld [vmem:[#allocation5 + $0x14] sm:$0xf]
    %v70 = vld [vmem:[#allocation5 + $0x18] sm:$0xf]
    %v71 = vld [vmem:[#allocation5 + $0x1c] sm:$0xf]
    %v72 = vld [vmem:[#allocation5 + $0x20] sm:$0xf]
    %v73 = vld [vmem:[#allocation5 + $0x24] sm:$0xf]
    %v74 = vld [vmem:[#allocation5 + $0x28] sm:$0xf]
    %v75 = vld [vmem:[#allocation5 + $0x2c] sm:$0xf]
    %v76 = vld [vmem:[#allocation5 + $0x30] sm:$0xf]
    %v77 = vld [vmem:[#allocation5 + $0x34] sm:$0xf]
    %v78 = vld [vmem:[#allocation5 + $0x38] sm:$0xf]
    %v79 = vld [vmem:[#allocation5 + $0x3c] sm:$0xf]
    %v80 = vunpack.c.l.bf16 %v64
    %v81 = vunpack.c.l.bf16 %v65
    %v82 = vunpack.c.l.bf16 %v66
    %v83 = vunpack.c.l.bf16 %v67
    %v84 = vunpack.c.l.bf16 %v68
    %v85 = vunpack.c.l.bf16 %v69
    %v86 = vunpack.c.l.bf16 %v70
    %v87 = vunpack.c.l.bf16 %v71
    %v88 = vunpack.c.l.bf16 %v72
    %v89 = vunpack.c.l.bf16 %v73
    %v90 = vunpack.c.l.bf16 %v74
    %v91 = vunpack.c.l.bf16 %v75
    %v92 = vunpack.c.l.bf16 %v76
    %v93 = vunpack.c.l.bf16 %v77
    %v94 = vunpack.c.l.bf16 %v78
    %v95 = vunpack.c.l.bf16 %v79
    %96 = vmatprep.subr.mxu0 0.0
    %97 = vmatpush1.msra.mxu0 %v80
    %98 = vmatprep.subr.mxu0 0.0
    %99 = vmatpush1.msra.mxu0 %v81
    %100 = vmatprep.subr.mxu0 0.0
    %101 = vmatpush1.msra.mxu0 %v82
    %102 = vmatprep.subr.mxu0 0.0
    %103 = vmatpush1.msra.mxu0 %v83
    %104 = vmatprep.subr.mxu0 0.0
    %105 = vmatpush1.msra.mxu0 %v84
    %106 = vmatprep.subr.mxu0 0.0
    %107 = vmatpush1.msra.mxu0 %v85
    %108 = vmatprep.subr.mxu0 0.0
    %109 = vmatpush1.msra.mxu0 %v86
    %110 = vmatprep.subr.mxu0 0.0
    %111 = vmatpush1.msra.mxu0 %v87
    %112 = vmatprep.subr.mxu0 0.0
    %113 = vmatpush1.msra.mxu0 %v88
    %114 = vmatprep.subr.mxu0 0.0
    %115 = vmatpush1.msra.mxu0 %v89
    %116 = vmatprep.subr.mxu0 0.0
    %117 = vmatpush1.msra.mxu0 %v90
    %118 = vmatprep.subr.mxu0 0.0
    %119 = vmatpush1.msra.mxu0 %v91
    %120 = vmatprep.subr.mxu0 0.0
    %121 = vmatpush1.msra.mxu0 %v92
    %122 = vmatprep.subr.mxu0 0.0
    %123 = vmatpush1.msra.mxu0 %v93
    %124 = vmatprep.subr.mxu0 0.0
    %125 = vmatpush1.msra.mxu0 %v94
    %126 = vmatprep.subr.mxu0 0.0
    %127 = vmatpush1.msra.mxu0 %v95
    %128 = vmatprep.subr.mxu0 0.0
    %129 = vmatpush1.msra.mxu0 0.0
    %130 = vmatprep.subr.mxu0 0.0
    %131 = vmatpush1.msra.mxu0 0.0
    %132 = vmatprep.subr.mxu0 0.0
    %133 = vmatpush1.msra.mxu0 0.0
    %134 = vmatprep.subr.mxu0 0.0
    %135 = vmatpush1.msra.mxu0 0.0
    %136 = vmatprep.subr.mxu0 0.0
    %137 = vmatpush1.msra.mxu0 0.0
    %138 = vmatprep.subr.mxu0 0.0
    %139 = vmatpush1.msra.mxu0 0.0
    %140 = vmatprep.subr.mxu0 0.0
    %141 = vmatpush1.msra.mxu0 0.0
    %142 = vmatprep.subr.mxu0 0.0
    %143 = vmatpush1.msra.mxu0 0.0
    %144 = vmatprep.subr.mxu0 0.0
    %145 = vmatpush1.msra.mxu0 0.0
    %146 = vmatprep.subr.mxu0 0.0
    %147 = vmatpush1.msra.mxu0 0.0
    %148 = vmatprep.subr.mxu0 0.0
    %149 = vmatpush1.msra.mxu0 0.0
    %150 = vmatprep.subr.mxu0 0.0
    %151 = vmatpush1.msra.mxu0 0.0
    %152 = vmatprep.subr.mxu0 0.0
    %153 = vmatpush1.msra.mxu0 0.0
    %154 = vmatprep.subr.mxu0 0.0
    %155 = vmatpush1.msra.mxu0 0.0
    %156 = vmatprep.subr.mxu0 0.0
    %157 = vmatpush1.msra.mxu0 0.0
    %158 = vmatprep.subr.mxu0 0.0
    %159 = vmatpush1.msra.mxu0 0.0
    %160 = vmatprep.mubr.f32.mxu0 0.0
    %161 = vmatmul.mubr.f32.gmra.mrb[0].mxu0 %v59
    %v162 = vpop.f32.mrb[0].mxu0
    %v163 = vadd.f32 0.0, %v162
    %v164 = vpop.f32.mrb[0].mxu0
    %165 = vdwg.mxu0
    %vm166 = vcmask 130048
    %v168 = vsel %vm166, %v58, 0
    %170 = vmatprep.subr.mxu0 0.0
    %171 = vmatpush1.msra.mxu0 %v62
    %172 = vmatprep.subr.mxu0 0.0
    %173 = vmatpush1.msra.mxu0 %v63
    %174 = vmatprep.subr.mxu0 0.0
    %175 = vmatpush1.msra.mxu0 0.0
    %176 = vmatprep.subr.mxu0 0.0
    %177 = vmatpush1.msra.mxu0 0.0
    %178 = vmatprep.subr.mxu0 0.0
    %179 = vmatpush1.msra.mxu0 0.0
    %180 = vmatprep.subr.mxu0 0.0
    %181 = vmatpush1.msra.mxu0 0.0
    %182 = vmatprep.subr.mxu0 0.0
    %183 = vmatpush1.msra.mxu0 0.0
    %184 = vmatprep.subr.mxu0 0.0
    %185 = vmatpush1.msra.mxu0 0.0
    %186 = vmatprep.subr.mxu0 0.0
    %187 = vmatpush1.msra.mxu0 0.0
    %188 = vmatprep.subr.mxu0 0.0
    %189 = vmatpush1.msra.mxu0 0.0
    %190 = vmatprep.subr.mxu0 0.0
    %191 = vmatpush1.msra.mxu0 0.0
    %192 = vmatprep.subr.mxu0 0.0
    %193 = vmatpush1.msra.mxu0 0.0
    %194 = vmatprep.subr.mxu0 0.0
    %195 = vmatpush1.msra.mxu0 0.0
    %196 = vmatprep.subr.mxu0 0.0
    %197 = vmatpush1.msra.mxu0 0.0
    %198 = vmatprep.subr.mxu0 0.0
    %199 = vmatpush1.msra.mxu0 0.0
    %200 = vmatprep.subr.mxu0 0.0
    %201 = vmatpush1.msra.mxu0 0.0
    %202 = vmatprep.subr.mxu0 0.0
    %203 = vmatpush1.msra.mxu0 0.0
    %204 = vmatprep.subr.mxu0 0.0
    %205 = vmatpush1.msra.mxu0 0.0
    %206 = vmatprep.subr.mxu0 0.0
    %207 = vmatpush1.msra.mxu0 0.0
    %208 = vmatprep.subr.mxu0 0.0
    %209 = vmatpush1.msra.mxu0 0.0
    %210 = vmatprep.subr.mxu0 0.0
    %211 = vmatpush1.msra.mxu0 0.0
    %212 = vmatprep.subr.mxu0 0.0
    %213 = vmatpush1.msra.mxu0 0.0
    %214 = vmatprep.subr.mxu0 0.0
    %215 = vmatpush1.msra.mxu0 0.0
    %216 = vmatprep.subr.mxu0 0.0
    %217 = vmatpush1.msra.mxu0 0.0
    %218 = vmatprep.subr.mxu0 0.0
    %219 = vmatpush1.msra.mxu0 0.0
    %220 = vmatprep.subr.mxu0 0.0
    %221 = vmatpush1.msra.mxu0 0.0
    %222 = vmatprep.subr.mxu0 0.0
    %223 = vmatpush1.msra.mxu0 0.0
    %224 = vmatprep.subr.mxu0 0.0
    %225 = vmatpush1.msra.mxu0 0.0
    %226 = vmatprep.subr.mxu0 0.0
    %227 = vmatpush1.msra.mxu0 0.0
    %228 = vmatprep.subr.mxu0 0.0
    %229 = vmatpush1.msra.mxu0 0.0
    %230 = vmatprep.subr.mxu0 0.0
    %231 = vmatpush1.msra.mxu0 0.0
    %232 = vmatprep.subr.mxu0 0.0
    %233 = vmatpush1.msra.mxu0 0.0
    %234 = vmatprep.mubr.f32.mxu0 0.0
    %235 = vmatmul.mubr.f32.gmra.mrb[0].mxu0 %v168
    %v236 = vpop.f32.mrb[0].mxu0
    %v237 = vadd.f32 %v163, %v236
    %v238 = vpop.f32.mrb[0].mxu0
    %239 = vdwg.mxu0
    %v240 = vld [vmem:[#allocation7] sm:$0x1]
    %v242 = vlaneseq
    %v243 = vshrl.u32 %v242, 7
    %v244 = vsub.s32 0, %v243
    %v245 = vrot.slane %v240, %v244
    %v247 = vadd.f32 %v237, %v245
    %v248 = vlaneseq
    %v249 = vand.u32 %v248, 127
    %vm250 = vcmp.lt.s32.totalorder %v249, 96
    %v251 = vmax.f32 %v247, 0.0
    %v252 = vsel %vm250, %v251, %v247
    %253 = vst [vmem:[#allocation8] sm:$0xff] %v252
    // Predicated region
    $region34: #{tpu_custom_call.1} parent=1 // pred_check
      _
    $region35: #{tpu_custom_call.1} parent=1 // pred_check_branch
      %255 = sbr.rel (0) target = $region37
    $region36: #{tpu_custom_call.1} parent=1 // pred_region
      %s257 = ssub.s32 128, 128
      %258 = vsyncadd [#allocation4], %s257
      %s260 = sshll.u32 [#allocation8], 4
      %s261 = int_to_ptr.vmem [resolvable:$true] %s260
      %263 = dma.vmem_to_hbm [thread:$0]  %s261, 128, %s5, [#allocation4]
    $region37: #{tpu_custom_call.1} parent=1 // pred_fallthru
      _
    // Predicated region
    $region38: #{tpu_custom_call.1} parent=1 // pred_check
      _
    $region39: #{tpu_custom_call.1} parent=1 // pred_check_branch
      %265 = sbr.rel (0) target = $region41
    $region40: #{tpu_custom_call.1} parent=1 // pred_region
      %266 = dma.done [#allocation4], 128
    $region41: #{tpu_custom_call.1} parent=1 // pred_fallthru
      _
    %267 = vsyncpa [#allocation3], 1
    %268 = vsyncpa [#allocation6], 1
    %269 = vsyncpa [#allocation4], 1

</llo_original>
